<compile_context>
chip_gen: v7x
topology: tpu7x:2x2x1
jax: 0.10.0
libtpu: 0.0.40
codegen_flags: <defaults>
</compile_context>

<pallas_src>
import functools

import jax
import jax.numpy as jnp
from jax.experimental import pallas as pl
from jax.experimental.pallas import tpu as pltpu

# ONNX HardSigmoid defaults (note: PyTorch nn.Hardsigmoid uses alpha=1/6).
ALPHA = 0.2
BETA = 0.5

_LANE = 128                                # TPU lane width
_LANE_CANDIDATES = (1024, 512, 256, 128)   # preferred lane-dense slab widths
_ROW_GRANULE = 32                          # covers sublane packing for f32/bf16/int8


def _cdiv(a: int, b: int) -> int:
    return -(-a // b)


def _round_up(a: int, b: int) -> int:
    return _cdiv(a, b) * b


def _target_block_bytes() -> int:
    """Per-generation block-bytes target (keeps the double-buffered in+out
    footprint comfortably under the scoped-VMEM default everywhere)."""
    try:
        kind = jax.devices()[0].device_kind.lower()
    except Exception:
        kind = ""
    if ("v6" in kind) or ("v7" in kind):
        return 4 << 20   # 4 MiB blocks -> 16 MiB footprint (< 32 MiB scoped default)
    return 2 << 20       # v5e / unknown: 2 MiB blocks -> 8 MiB (< 16 MiB default)


def _hard_sigmoid_kernel(x_ref, o_ref, *, alpha, beta):
    x = x_ref[...]
    y = alpha * x + beta  # weak-typed Python consts: stays in x's dtype
    zero = jnp.asarray(0.0, dtype=x.dtype)
    one = jnp.asarray(1.0, dtype=x.dtype)
    o_ref[...] = jnp.minimum(jnp.maximum(y, zero), one)


def _hard_sigmoid_2d(x2d: jax.Array, alpha: float, beta: float,
                     *, donate_input: bool = False) -> jax.Array:
    rows, lanes = x2d.shape
    itemsize = jnp.dtype(x2d.dtype).itemsize

    # Keep block bytes roughly constant regardless of dtype / lane width.
    row_tile = (_target_block_bytes() // (lanes * itemsize)) // _ROW_GRANULE * _ROW_GRANULE
    row_tile = max(_ROW_GRANULE, row_tile)
    row_tile = min(row_tile, _round_up(rows, _ROW_GRANULE))

    # Ensure >= 2 grid steps whenever rows allow, so the "parallel" axis can
    # shard across the two TensorCores on v7x (near-free elsewhere).
    if rows > _ROW_GRANULE:
        row_tile = min(row_tile, _round_up(_cdiv(rows, 2), _ROW_GRANULE))

    grid = (_cdiv(rows, row_tile),)  # ragged last row-block is masked by Pallas

    kernel = functools.partial(_hard_sigmoid_kernel, alpha=alpha, beta=beta)
    return pl.pallas_call(
        kernel,
        out_shape=jax.ShapeDtypeStruct((rows, lanes), x2d.dtype),
        grid=grid,
        in_specs=[pl.BlockSpec((row_tile, lanes), lambda i: (i, 0))],
        out_specs=pl.BlockSpec((row_tile, lanes), lambda i: (i, 0)),
        input_output_aliases=({0: 0} if donate_input else {}),
        compiler_params=pltpu.CompilerParams(
            dimension_semantics=("parallel",),
        ),
    )(x2d)


def hard_sigmoid(x: jax.Array, alpha: float = ALPHA, beta: float = BETA,
                 *, donate_input: bool = False) -> jax.Array:
    """clip(alpha * x + beta, 0, 1) via a Pallas TPU kernel.

    donate_input=True aliases the output onto the input buffer (only safe if
    the caller never reuses the input activation); saves an HBM allocation,
    bandwidth is unchanged.
    """
    orig_shape = x.shape
    n = x.size
    if n == 0:
        return x
    flat = x.reshape(-1)

    # Widest lane slab that divides n exactly -> no pad copy, no output slice.
    lanes = None
    for w in _LANE_CANDIDATES:
        if n % w == 0:
            lanes = w
            break

    if lanes is not None:
        out2d = _hard_sigmoid_2d(flat.reshape(n // lanes, lanes), alpha, beta,
                                 donate_input=donate_input)
        return out2d.reshape(orig_shape)

    # Rare unaligned case (n % 128 != 0): kernel over the 128-aligned prefix,
    # tiny plain-jnp clip for the < 128-element tail.
    # TODO(synk): the output concatenate re-materializes the flat output once;
    # acceptable only because this path is rare and small inputs are cheap.
    n_main = n - (n % _LANE)
    if n_main == 0:
        out = jnp.clip(alpha * flat + beta, 0.0, 1.0).astype(flat.dtype)
        return out.reshape(orig_shape)
    main = _hard_sigmoid_2d(flat[:n_main].reshape(n_main // _LANE, _LANE), alpha, beta)
    tail = jnp.clip(alpha * flat[n_main:] + beta, 0.0, 1.0).astype(flat.dtype)
    out = jnp.concatenate([main.reshape(-1), tail])
    return out.reshape(orig_shape)


if __name__ == "__main__":
    key = jax.random.PRNGKey(0)
    # NCHW input, small shape consistent with a conv-style activation input.
    x = jax.random.normal(key, (2, 4, 16, 16), dtype=jnp.float32) * 5.0

    y = hard_sigmoid(x)
    jax.block_until_ready(y)

    # Reference check (plain JAX).
    y_ref = jnp.clip(ALPHA * x + BETA, 0.0, 1.0)
    assert y.shape == x.shape and y.dtype == x.dtype
    assert jnp.max(jnp.abs(y - y_ref)) < 1e-6

    # Exercise the unaligned-tail path once for correctness as well.
    x_odd = jax.random.normal(jax.random.PRNGKey(1), (3, 5, 7), dtype=jnp.float32) * 5.0
    y_odd = hard_sigmoid(x_odd)
    jax.block_until_ready(y_odd)
    y_odd_ref = jnp.clip(ALPHA * x_odd + BETA, 0.0, 1.0)
    assert jnp.max(jnp.abs(y_odd - y_odd_ref)) < 1e-6

    print("KERNEL_OK")
</pallas_src>

<mosaic_0001>
module attributes {stable_mosaic.version = 11 : i64} {
  func.func @_hard_sigmoid_kernel(%arg0: i32, %arg1: memref<32x1024xf32, #tpu.memory_space<vmem>>, %arg2: memref<32x1024xf32, #tpu.memory_space<vmem>>) attributes {dimension_semantics = [#tpu.dimension_semantics<parallel>], iteration_bounds = array<i64: 1>, scalar_prefetch = 0 : i64, scratch_operands = 0 : i64, tpu.core_type = #tpu.core_type<tc>, window_params = [{transform_indices = @transform_0, window_bounds = array<i64: 32, 1024>}, {transform_indices = @transform_1, window_bounds = array<i64: 32, 1024>}]} {
    %c0 = arith.constant 0 : index
    %c0_0 = arith.constant 0 : index
    %0 = vector.load %arg1[%c0, %c0_0] : memref<32x1024xf32, #tpu.memory_space<vmem>>, vector<32x1024xf32>
    %cst = arith.constant 2.000000e-01 : f32
    %1 = vector.broadcast %cst : f32 to vector<32x1024xf32>
    %2 = arith.mulf %1, %0 : vector<32x1024xf32>
    %cst_1 = arith.constant 5.000000e-01 : f32
    %3 = vector.broadcast %cst_1 : f32 to vector<32x1024xf32>
    %4 = arith.addf %2, %3 : vector<32x1024xf32>
    %cst_2 = arith.constant 0.000000e+00 : f32
    %5 = vector.broadcast %cst_2 : f32 to vector<32x1024xf32>
    %6 = arith.maximumf %4, %5 : vector<32x1024xf32>
    %cst_3 = arith.constant 1.000000e+00 : f32
    %7 = vector.broadcast %cst_3 : f32 to vector<32x1024xf32>
    %8 = arith.minimumf %6, %7 : vector<32x1024xf32>
    %c0_4 = arith.constant 0 : index
    %c0_5 = arith.constant 0 : index
    %9 = vector.load %arg2[%c0_4, %c0_5] : memref<32x1024xf32, #tpu.memory_space<vmem>>, vector<32x1024xf32>
    tpu.vector_store %arg2[%c0_4, %c0_5], %8 {strides = array<i32>} : memref<32x1024xf32, #tpu.memory_space<vmem>>, vector<32x1024xf32>,
    return
  }
  func.func @transform_0(%arg0: i32) -> (i32, i32) {
    %c0_i32 = arith.constant 0 : i32
    %c0_i32_0 = arith.constant 0 : i32
    return %arg0, %c0_i32 : i32, i32
  }
  func.func @transform_1(%arg0: i32) -> (i32, i32) {
    %c0_i32 = arith.constant 0 : i32
    %c0_i32_0 = arith.constant 0 : i32
    return %arg0, %c0_i32 : i32, i32
  }
}

</mosaic_0001>

<llo_original>
// kernel: tpu_custom_call.1
$region0: #{tpu_custom_call.1}
  #allocation0 [shape = 'u32[]', space=smem, size = 0x4, offset = 0x4, fixed_abs, tag = 'smem constant byte address 0x4 - core index']
  #allocation1 [shape = 'u32[144,128]{1,0:T(1,128)}', space=vmem, size = 0x12000, scoped, tag = 'internal scratch']
  %s0 = inlined_call_operand.hbm [shape: f32[2,1024], index: 0, kind: input, shape index: {}]
  %s1 = inlined_call_operand.hbm [shape: f32[2,1024], index: 1, kind: output, shape index: {}]
  %s2 = sld [smem:[#allocation0]]
  $region18: #{tpu_custom_call.1} parent=0
    _
  %s4 = ssub.s32 1, %s2
  %s5 = scalar_select 0, %s4, %s2
  $region1: #{tpu_custom_call.1} parent=0
    #allocation2 [shape = 'u8[131072]{0}', space=vmem, size = 0x20000, scoped, tag = 'input window, operand 0, single buffered']
    #allocation3 [shape = 's32[1]{0}', space=sflag, size = 0x4, scoped, tag = 'scoped memory for tpu_custom_call.1']
    #allocation4 [shape = 's32[1]{0}', space=sflag, size = 0x4, scoped, tag = 'scoped memory for tpu_custom_call.1']
    #allocation5 [shape = 'u8[131072]{0}', space=vmem, size = 0x20000, scoped, tag = 'output window, operand 0, single buffered']
    %6 = vsyncpa [#allocation3], 0
    %7 = vsyncpa [#allocation4], 0
    // Predicated region
    $region2: #{tpu_custom_call.1} parent=1 // pred_check
      _
    $region3: #{tpu_custom_call.1} parent=1 // pred_check_branch
      %9 = sbr.rel (0) target = $region5
    $region4: #{tpu_custom_call.1} parent=1 // pred_region
      %s11 = ssub.s32 4096, 256
      %12 = vsyncadd [#allocation3], %s11
      %s13 = sshll.u32 [#allocation2], 4
      %s14 = int_to_ptr.vmem [resolvable:$true] %s13
      %19 = dma.hbm_to_vmem [thread:$0]  %s0, 256, %s14, [#allocation3], 256, 256, 16
    $region5: #{tpu_custom_call.1} parent=1 // pred_fallthru
      _
    // Predicated region
    $region6: #{tpu_custom_call.1} parent=1 // pred_check
      _
    $region7: #{tpu_custom_call.1} parent=1 // pred_check_branch
      %21 = sbr.rel (0) target = $region9
    $region8: #{tpu_custom_call.1} parent=1 // pred_region
      %22 = dma.done [#allocation3], 4096
    $region9: #{tpu_custom_call.1} parent=1 // pred_fallthru
      _
    %v23 = vld [vmem:[#allocation2] sm:$0xff]
    %v24 = vld [vmem:[#allocation2 + $0x8] sm:$0xff]
    %v25 = vld [vmem:[#allocation2 + $0x10] sm:$0xff]
    %v26 = vld [vmem:[#allocation2 + $0x18] sm:$0xff]
    %v27 = vld [vmem:[#allocation2 + $0x20] sm:$0xff]
    %v28 = vld [vmem:[#allocation2 + $0x28] sm:$0xff]
    %v29 = vld [vmem:[#allocation2 + $0x30] sm:$0xff]
    %v30 = vld [vmem:[#allocation2 + $0x38] sm:$0xff]
    %v31 = vld [vmem:[#allocation2 + $0x40] sm:$0xff]
    %v32 = vld [vmem:[#allocation2 + $0x48] sm:$0xff]
    %v33 = vld [vmem:[#allocation2 + $0x50] sm:$0xff]
    %v34 = vld [vmem:[#allocation2 + $0x58] sm:$0xff]
    %v35 = vld [vmem:[#allocation2 + $0x60] sm:$0xff]
    %v36 = vld [vmem:[#allocation2 + $0x68] sm:$0xff]
    %v37 = vld [vmem:[#allocation2 + $0x70] sm:$0xff]
    %v38 = vld [vmem:[#allocation2 + $0x78] sm:$0xff]
    %v39 = vld [vmem:[#allocation2 + $0x80] sm:$0xff]
    %v40 = vld [vmem:[#allocation2 + $0x88] sm:$0xff]
    %v41 = vld [vmem:[#allocation2 + $0x90] sm:$0xff]
    %v42 = vld [vmem:[#allocation2 + $0x98] sm:$0xff]
    %v43 = vld [vmem:[#allocation2 + $0xa0] sm:$0xff]
    %v44 = vld [vmem:[#allocation2 + $0xa8] sm:$0xff]
    %v45 = vld [vmem:[#allocation2 + $0xb0] sm:$0xff]
    %v46 = vld [vmem:[#allocation2 + $0xb8] sm:$0xff]
    %v47 = vld [vmem:[#allocation2 + $0xc0] sm:$0xff]
    %v48 = vld [vmem:[#allocation2 + $0xc8] sm:$0xff]
    %v49 = vld [vmem:[#allocation2 + $0xd0] sm:$0xff]
    %v50 = vld [vmem:[#allocation2 + $0xd8] sm:$0xff]
    %v51 = vld [vmem:[#allocation2 + $0xe0] sm:$0xff]
    %v52 = vld [vmem:[#allocation2 + $0xe8] sm:$0xff]
    %v53 = vld [vmem:[#allocation2 + $0xf0] sm:$0xff]
    %v54 = vld [vmem:[#allocation2 + $0xf8] sm:$0xff]
    %v55 = vmul.f32 %v23, 0.2
    %v56 = vmul.f32 %v24, 0.2
    %v57 = vmul.f32 %v25, 0.2
    %v58 = vmul.f32 %v26, 0.2
    %v59 = vmul.f32 %v27, 0.2
    %v60 = vmul.f32 %v28, 0.2
    %v61 = vmul.f32 %v29, 0.2
    %v62 = vmul.f32 %v30, 0.2
    %v63 = vmul.f32 %v31, 0.2
    %v64 = vmul.f32 %v32, 0.2
    %v65 = vmul.f32 %v33, 0.2
    %v66 = vmul.f32 %v34, 0.2
    %v67 = vmul.f32 %v35, 0.2
    %v68 = vmul.f32 %v36, 0.2
    %v69 = vmul.f32 %v37, 0.2
    %v70 = vmul.f32 %v38, 0.2
    %v71 = vmul.f32 %v39, 0.2
    %v72 = vmul.f32 %v40, 0.2
    %v73 = vmul.f32 %v41, 0.2
    %v74 = vmul.f32 %v42, 0.2
    %v75 = vmul.f32 %v43, 0.2
    %v76 = vmul.f32 %v44, 0.2
    %v77 = vmul.f32 %v45, 0.2
    %v78 = vmul.f32 %v46, 0.2
    %v79 = vmul.f32 %v47, 0.2
    %v80 = vmul.f32 %v48, 0.2
    %v81 = vmul.f32 %v49, 0.2
    %v82 = vmul.f32 %v50, 0.2
    %v83 = vmul.f32 %v51, 0.2
    %v84 = vmul.f32 %v52, 0.2
    %v85 = vmul.f32 %v53, 0.2
    %v86 = vmul.f32 %v54, 0.2
    %v87 = vadd.f32 %v55, 0.5
    %v88 = vadd.f32 %v56, 0.5
    %v89 = vadd.f32 %v57, 0.5
    %v90 = vadd.f32 %v58, 0.5
    %v91 = vadd.f32 %v59, 0.5
    %v92 = vadd.f32 %v60, 0.5
    %v93 = vadd.f32 %v61, 0.5
    %v94 = vadd.f32 %v62, 0.5
    %v95 = vadd.f32 %v63, 0.5
    %v96 = vadd.f32 %v64, 0.5
    %v97 = vadd.f32 %v65, 0.5
    %v98 = vadd.f32 %v66, 0.5
    %v99 = vadd.f32 %v67, 0.5
    %v100 = vadd.f32 %v68, 0.5
    %v101 = vadd.f32 %v69, 0.5
    %v102 = vadd.f32 %v70, 0.5
    %v103 = vadd.f32 %v71, 0.5
    %v104 = vadd.f32 %v72, 0.5
    %v105 = vadd.f32 %v73, 0.5
    %v106 = vadd.f32 %v74, 0.5
    %v107 = vadd.f32 %v75, 0.5
    %v108 = vadd.f32 %v76, 0.5
    %v109 = vadd.f32 %v77, 0.5
    %v110 = vadd.f32 %v78, 0.5
    %v111 = vadd.f32 %v79, 0.5
    %v112 = vadd.f32 %v80, 0.5
    %v113 = vadd.f32 %v81, 0.5
    %v114 = vadd.f32 %v82, 0.5
    %v115 = vadd.f32 %v83, 0.5
    %v116 = vadd.f32 %v84, 0.5
    %v117 = vadd.f32 %v85, 0.5
    %v118 = vadd.f32 %v86, 0.5
    %v119 = vmax.f32 %v87, 0.0
    %v120 = vmax.f32 %v88, 0.0
    %v121 = vmax.f32 %v89, 0.0
    %v122 = vmax.f32 %v90, 0.0
    %v123 = vmax.f32 %v91, 0.0
    %v124 = vmax.f32 %v92, 0.0
    %v125 = vmax.f32 %v93, 0.0
    %v126 = vmax.f32 %v94, 0.0
    %v127 = vmax.f32 %v95, 0.0
    %v128 = vmax.f32 %v96, 0.0
    %v129 = vmax.f32 %v97, 0.0
    %v130 = vmax.f32 %v98, 0.0
    %v131 = vmax.f32 %v99, 0.0
    %v132 = vmax.f32 %v100, 0.0
    %v133 = vmax.f32 %v101, 0.0
    %v134 = vmax.f32 %v102, 0.0
    %v135 = vmax.f32 %v103, 0.0
    %v136 = vmax.f32 %v104, 0.0
    %v137 = vmax.f32 %v105, 0.0
    %v138 = vmax.f32 %v106, 0.0
    %v139 = vmax.f32 %v107, 0.0
    %v140 = vmax.f32 %v108, 0.0
    %v141 = vmax.f32 %v109, 0.0
    %v142 = vmax.f32 %v110, 0.0
    %v143 = vmax.f32 %v111, 0.0
    %v144 = vmax.f32 %v112, 0.0
    %v145 = vmax.f32 %v113, 0.0
    %v146 = vmax.f32 %v114, 0.0
    %v147 = vmax.f32 %v115, 0.0
    %v148 = vmax.f32 %v116, 0.0
    %v149 = vmax.f32 %v117, 0.0
    %v150 = vmax.f32 %v118, 0.0
    %v151 = vmin.f32 %v119, 1.0
    %v152 = vmin.f32 %v120, 1.0
    %v153 = vmin.f32 %v121, 1.0
    %v154 = vmin.f32 %v122, 1.0
    %v155 = vmin.f32 %v123, 1.0
    %v156 = vmin.f32 %v124, 1.0
    %v157 = vmin.f32 %v125, 1.0
    %v158 = vmin.f32 %v126, 1.0
    %v159 = vmin.f32 %v127, 1.0
    %v160 = vmin.f32 %v128, 1.0
    %v161 = vmin.f32 %v129, 1.0
    %v162 = vmin.f32 %v130, 1.0
    %v163 = vmin.f32 %v131, 1.0
    %v164 = vmin.f32 %v132, 1.0
    %v165 = vmin.f32 %v133, 1.0
    %v166 = vmin.f32 %v134, 1.0
    %v167 = vmin.f32 %v135, 1.0
    %v168 = vmin.f32 %v136, 1.0
    %v169 = vmin.f32 %v137, 1.0
    %v170 = vmin.f32 %v138, 1.0
    %v171 = vmin.f32 %v139, 1.0
    %v172 = vmin.f32 %v140, 1.0
    %v173 = vmin.f32 %v141, 1.0
    %v174 = vmin.f32 %v142, 1.0
    %v175 = vmin.f32 %v143, 1.0
    %v176 = vmin.f32 %v144, 1.0
    %v177 = vmin.f32 %v145, 1.0
    %v178 = vmin.f32 %v146, 1.0
    %v179 = vmin.f32 %v147, 1.0
    %v180 = vmin.f32 %v148, 1.0
    %v181 = vmin.f32 %v149, 1.0
    %v182 = vmin.f32 %v150, 1.0
    %183 = vst [vmem:[#allocation5] sm:$0xff] %v151
    %184 = vst [vmem:[#allocation5 + $0x8] sm:$0xff] %v152
    %185 = vst [vmem:[#allocation5 + $0x10] sm:$0xff] %v153
    %186 = vst [vmem:[#allocation5 + $0x18] sm:$0xff] %v154
    %187 = vst [vmem:[#allocation5 + $0x20] sm:$0xff] %v155
    %188 = vst [vmem:[#allocation5 + $0x28] sm:$0xff] %v156
    %189 = vst [vmem:[#allocation5 + $0x30] sm:$0xff] %v157
    %190 = vst [vmem:[#allocation5 + $0x38] sm:$0xff] %v158
    %191 = vst [vmem:[#allocation5 + $0x40] sm:$0xff] %v159
    %192 = vst [vmem:[#allocation5 + $0x48] sm:$0xff] %v160
    %193 = vst [vmem:[#allocation5 + $0x50] sm:$0xff] %v161
    %194 = vst [vmem:[#allocation5 + $0x58] sm:$0xff] %v162
    %195 = vst [vmem:[#allocation5 + $0x60] sm:$0xff] %v163
    %196 = vst [vmem:[#allocation5 + $0x68] sm:$0xff] %v164
    %197 = vst [vmem:[#allocation5 + $0x70] sm:$0xff] %v165
    %198 = vst [vmem:[#allocation5 + $0x78] sm:$0xff] %v166
    %199 = vst [vmem:[#allocation5 + $0x80] sm:$0xff] %v167
    %200 = vst [vmem:[#allocation5 + $0x88] sm:$0xff] %v168
    %201 = vst [vmem:[#allocation5 + $0x90] sm:$0xff] %v169
    %202 = vst [vmem:[#allocation5 + $0x98] sm:$0xff] %v170
    %203 = vst [vmem:[#allocation5 + $0xa0] sm:$0xff] %v171
    %204 = vst [vmem:[#allocation5 + $0xa8] sm:$0xff] %v172
    %205 = vst [vmem:[#allocation5 + $0xb0] sm:$0xff] %v173
    %206 = vst [vmem:[#allocation5 + $0xb8] sm:$0xff] %v174
    %207 = vst [vmem:[#allocation5 + $0xc0] sm:$0xff] %v175
    %208 = vst [vmem:[#allocation5 + $0xc8] sm:$0xff] %v176
    %209 = vst [vmem:[#allocation5 + $0xd0] sm:$0xff] %v177
    %210 = vst [vmem:[#allocation5 + $0xd8] sm:$0xff] %v178
    %211 = vst [vmem:[#allocation5 + $0xe0] sm:$0xff] %v179
    %212 = vst [vmem:[#allocation5 + $0xe8] sm:$0xff] %v180
    %213 = vst [vmem:[#allocation5 + $0xf0] sm:$0xff] %v181
    %214 = vst [vmem:[#allocation5 + $0xf8] sm:$0xff] %v182
    // Predicated region
    $region10: #{tpu_custom_call.1} parent=1 // pred_check
      _
    $region11: #{tpu_custom_call.1} parent=1 // pred_check_branch
      %216 = sbr.rel (0) target = $region13
    $region12: #{tpu_custom_call.1} parent=1 // pred_region
      %s218 = ssub.s32 4096, 256
      %219 = vsyncadd [#allocation4], %s218
      %s220 = sshll.u32 [#allocation5], 4
      %s221 = int_to_ptr.vmem [resolvable:$true] %s220
      %226 = dma.vmem_to_hbm [thread:$0]  %s221, 256, %s1, [#allocation4], 256, 256, 16
    $region13: #{tpu_custom_call.1} parent=1 // pred_fallthru
      _
    // Predicated region
    $region14: #{tpu_custom_call.1} parent=1 // pred_check
      _
    $region15: #{tpu_custom_call.1} parent=1 // pred_check_branch
      %228 = sbr.rel (0) target = $region17
    $region16: #{tpu_custom_call.1} parent=1 // pred_region
      %229 = dma.done [#allocation4], 4096
    $region17: #{tpu_custom_call.1} parent=1 // pred_fallthru
      _
    %230 = vsyncpa [#allocation3], 1
    %231 = vsyncpa [#allocation4], 1

</llo_original>
